<compile_context>
chip_gen: v5e
topology: v5e:2x2
jax: 0.10.0
libtpu: 0.0.40
codegen_flags: <defaults>
</compile_context>

<pallas_src>
import functools

import jax
import jax.numpy as jnp
from jax.experimental import pallas as pl
from jax.experimental.pallas import tpu as pltpu  # noqa: F401  (imported per convention)

LANES = 128  # vreg lane width; packed output slab is (B, LANES)


def _agent_kernel(x_ref, s_ref, wt_ref, wb_ref, b_ref, out_ref, *, num_actions):
    A = num_actions
    B = x_ref.shape[0]

    # ---- Linear head on MXU (bf16 operands, f32 accumulate). ----
    x = x_ref[...].astype(jnp.bfloat16)            # current state   (B, Dh)
    s = s_ref[...].astype(jnp.bfloat16)            # previous state  (B, Dh)
    y = (jnp.dot(x, wt_ref[...], preferred_element_type=jnp.float32)
         + jnp.dot(s, wb_ref[...], preferred_element_type=jnp.float32)
         + b_ref[...].astype(jnp.float32))         # logits (B, A), f32

    # ---- Numerically-stable softmax / log-softmax / entropy (f32 VPU + EUP). ----
    m = jnp.max(y, axis=-1, keepdims=True)
    z = y - m
    e = jnp.exp(z)
    ssum = jnp.sum(e, axis=-1, keepdims=True)
    logs = jnp.log(ssum)
    p = e * pl.reciprocal(ssum, approx=False)      # probabilities
    logp = z - logs                                # log-softmax
    ent = -jnp.sum(p * logp, axis=-1, keepdims=True)   # (B, 1) entropy

    # ---- Greedy action = argmax(logits), fused in-kernel. ----
    lane_a = jax.lax.broadcasted_iota(jnp.int32, (B, A), 1)
    act = jnp.min(jnp.where(y == m, lane_a, jnp.int32(LANES)),
                  axis=-1, keepdims=True)          # (B, 1) first-max index
    # At the argmax z == 0, so -log_prob(action) == log(sum(exp(z))).
    nlp = logs                                     # (B, 1) neg-log-prob of greedy action

    # ---- Pack into one lane-dense (B, 128) slab: single unmasked 128-lane store. ----
    # probs -> lanes [0, A), logp -> lanes [A, 2A): exact 0/1 placement matmuls.
    row = jax.lax.broadcasted_iota(jnp.int32, (A, LANES), 0)
    col = jax.lax.broadcasted_iota(jnp.int32, (A, LANES), 1)
    place_p = (col == row).astype(jnp.float32)
    place_l = (col == row + A).astype(jnp.float32)
    slab = (jnp.dot(p, place_p, preferred_element_type=jnp.float32)
            + jnp.dot(logp, place_l, preferred_element_type=jnp.float32))
    # Scalars dropped into individual lanes with iota masks (pure VPU, safe lowering).
    lane = jax.lax.broadcasted_iota(jnp.int32, (B, LANES), 1)
    slab = (slab
            + jnp.where(lane == 2 * A, ent, 0.0)
            + jnp.where(lane == 2 * A + 1, nlp, 0.0)
            + jnp.where(lane == 2 * A + 2, act.astype(jnp.float32), 0.0))
    out_ref[...] = slab


def make_softmax_agent_forward(*, channels, height, width, num_actions):
    """Jitted forward for Softmax_Agent with an injected Linear model."""
    Dh = channels * height * width          # per-stream flattened feature dim
    A = num_actions
    assert 2 * A + 3 <= LANES, "num_actions too large for the packed output slab"

    kernel = functools.partial(_agent_kernel, num_actions=A)

    @jax.jit
    def forward(x_nchw, p_state_nchw, w_top_bf16, w_bot_bf16, b):
        B = x_nchw.shape[0]
        x_flat = x_nchw.reshape(B, Dh)
        s_flat = p_state_nchw.reshape(B, Dh)
        slab = pl.pallas_call(
            kernel,
            out_shape=jax.ShapeDtypeStruct((B, LANES), jnp.float32),
            in_specs=[
                pl.BlockSpec((B, Dh), lambda: (0, 0)),
                pl.BlockSpec((B, Dh), lambda: (0, 0)),
                pl.BlockSpec((Dh, A), lambda: (0, 0)),
                pl.BlockSpec((Dh, A), lambda: (0, 0)),
                pl.BlockSpec((1, A), lambda: (0, 0)),
            ],
            out_specs=pl.BlockSpec((B, LANES), lambda: (0, 0)),
        )(x_flat, s_flat, w_top_bf16, w_bot_bf16, b.reshape(1, A))

        probs = slab[:, :A]
        logp = slab[:, A:2 * A]
        entropy = slab[:, 2 * A]
        neg_log_prob = slab[:, 2 * A + 1]
        action = slab[:, 2 * A + 2].astype(jnp.int32)
        return action, neg_log_prob, entropy, probs, logp

    return forward


if __name__ == "__main__":
    key = jax.random.PRNGKey(0)
    kx, kw, kb = jax.random.split(key, 3)

    B = 8                       # batch of agents/timesteps (fills vreg sublanes)
    C, H, W_sp = 4, 16, 16
    A = 16                      # number of actions
    Dh = C * H * W_sp           # 1024 per stream
    D = 2 * Dh                  # 2048 = flattened dim after the module's channel concat

    x = jax.random.normal(kx, (B, C, H, W_sp), dtype=jnp.float32)
    w = jax.random.normal(kw, (D, A), dtype=jnp.float32) * 0.02
    b = jax.random.normal(kb, (A,), dtype=jnp.float32) * 0.01

    # First agent step: p_state is not a tensor yet -> cat(x, x), i.e. p_state := x.
    p_state = x
    # Split the Linear weight once into x-half / p_state-half and cast to bf16
    # (halves the only non-trivial HBM traffic; MXU is bf16-native on all generations).
    w_top = w[:Dh].astype(jnp.bfloat16)
    w_bot = w[Dh:].astype(jnp.bfloat16)

    forward = make_softmax_agent_forward(channels=C, height=H, width=W_sp, num_actions=A)
    action, neg_log_prob, entropy, probs, logp = forward(x, p_state, w_top, w_bot, b)
    jax.block_until_ready((action, neg_log_prob, entropy, probs, logp))

    # ---- Reference (same bf16 weights, plain JAX) ----
    x_flat = x.reshape(B, Dh).astype(jnp.bfloat16)
    y_ref = (jnp.dot(x_flat, w_top, preferred_element_type=jnp.float32)
             + jnp.dot(x_flat, w_bot, preferred_element_type=jnp.float32) + b)
    p_ref = jax.nn.softmax(y_ref, axis=-1)

    assert jnp.allclose(jnp.sum(probs, axis=-1), 1.0, atol=1e-5)
    assert bool(jnp.isfinite(entropy).all())
    assert jnp.allclose(probs, p_ref, atol=2e-2)
    assert jnp.allclose(
        neg_log_prob,
        -jnp.take_along_axis(logp, action[:, None], axis=-1)[:, 0],
        atol=1e-4,
    )
    print("KERNEL_OK")
</pallas_src>

<mosaic_0001>
module attributes {stable_mosaic.version = 11 : i64} {
  func.func @_agent_kernel(%arg0: memref<8x1024xf32, #tpu.memory_space<vmem>>, %arg1: memref<8x1024xf32, #tpu.memory_space<vmem>>, %arg2: memref<1024x16xbf16, #tpu.memory_space<vmem>>, %arg3: memref<1024x16xbf16, #tpu.memory_space<vmem>>, %arg4: memref<1x16xf32, #tpu.memory_space<vmem>>, %arg5: memref<8x128xf32, #tpu.memory_space<vmem>>) attributes {dimension_semantics = [], scalar_prefetch = 0 : i64, scratch_operands = 0 : i64, tpu.core_type = #tpu.core_type<tc>} {
    %c0 = arith.constant 0 : index
    %c0_0 = arith.constant 0 : index
    %0 = vector.load %arg0[%c0, %c0_0] : memref<8x1024xf32, #tpu.memory_space<vmem>>, vector<8x1024xf32>
    %1 = arith.truncf %0 : vector<8x1024xf32> to vector<8x1024xbf16>
    %c0_1 = arith.constant 0 : index
    %c0_2 = arith.constant 0 : index
    %2 = vector.load %arg1[%c0_1, %c0_2] : memref<8x1024xf32, #tpu.memory_space<vmem>>, vector<8x1024xf32>
    %3 = arith.truncf %2 : vector<8x1024xf32> to vector<8x1024xbf16>
    %c0_3 = arith.constant 0 : index
    %c0_4 = arith.constant 0 : index
    %4 = vector.load %arg2[%c0_3, %c0_4] : memref<1024x16xbf16, #tpu.memory_space<vmem>>, vector<1024x16xbf16>
    %cst = arith.constant dense<0.000000e+00> : vector<8x16xf32>
    %5 = tpu.matmul %1, %4, %cst {dimension_numbers = #tpu.dot_dimension_numbers<[1], [0], [0], [1], [0, 0, 1, 1], [], []>} : vector<8x1024xbf16>, vector<1024x16xbf16>, vector<8x16xf32> -> vector<8x16xf32>
    %c0_5 = arith.constant 0 : index
    %c0_6 = arith.constant 0 : index
    %6 = vector.load %arg3[%c0_5, %c0_6] : memref<1024x16xbf16, #tpu.memory_space<vmem>>, vector<1024x16xbf16>
    %cst_7 = arith.constant dense<0.000000e+00> : vector<8x16xf32>
    %7 = tpu.matmul %3, %6, %cst_7 {dimension_numbers = #tpu.dot_dimension_numbers<[1], [0], [0], [1], [0, 0, 1, 1], [], []>} : vector<8x1024xbf16>, vector<1024x16xbf16>, vector<8x16xf32> -> vector<8x16xf32>
    %8 = arith.addf %5, %7 : vector<8x16xf32>
    %c0_8 = arith.constant 0 : index
    %c0_9 = arith.constant 0 : index
    %9 = vector.load %arg4[%c0_8, %c0_9] : memref<1x16xf32, #tpu.memory_space<vmem>>, vector<1x16xf32>
    %10 = vector.broadcast %9 : vector<1x16xf32> to vector<8x16xf32>
    %11 = arith.addf %8, %10 : vector<8x16xf32>
    %cst_10 = arith.constant dense<0xFF800000> : vector<8xf32>
    %12 = vector.multi_reduction <maximumf>, %11, %cst_10 [1] : vector<8x16xf32> to vector<8xf32>
    %13 = vector.shape_cast %12 : vector<8xf32> to vector<8x1xf32>
    %14 = vector.broadcast %13 : vector<8x1xf32> to vector<8x16xf32>
    %15 = arith.subf %11, %14 : vector<8x16xf32>
    %16 = math.exp %15 : vector<8x16xf32>
    %cst_11 = arith.constant dense<0.000000e+00> : vector<8xf32>
    %17 = vector.multi_reduction <add>, %16, %cst_11 [1] : vector<8x16xf32> to vector<8xf32>
    %18 = vector.shape_cast %17 : vector<8xf32> to vector<8x1xf32>
    %19 = math.log %18 : vector<8x1xf32>
    %20 = tpu.reciprocal %18 : vector<8x1xf32> -> vector<8x1xf32>
    %21 = vector.broadcast %20 : vector<8x1xf32> to vector<8x16xf32>
    %22 = arith.mulf %16, %21 : vector<8x16xf32>
    %23 = vector.broadcast %19 : vector<8x1xf32> to vector<8x16xf32>
    %24 = arith.subf %15, %23 : vector<8x16xf32>
    %25 = arith.mulf %22, %24 : vector<8x16xf32>
    %cst_12 = arith.constant dense<0.000000e+00> : vector<8xf32>
    %26 = vector.multi_reduction <add>, %25, %cst_12 [1] : vector<8x16xf32> to vector<8xf32>
    %27 = vector.shape_cast %26 : vector<8xf32> to vector<8x1xf32>
    %cst_13 = arith.constant 0.000000e+00 : f32
    %28 = vector.broadcast %cst_13 : f32 to vector<8x1xf32>
    %29 = arith.subf %28, %27 : vector<8x1xf32>
    %30 = tpu.iota {dimensions = array<i32: 1>} : vector<8x16xi32>
    %31 = vector.broadcast %13 : vector<8x1xf32> to vector<8x16xf32>
    %32 = arith.cmpf oeq, %11, %31 : vector<8x16xf32>
    %c128_i32 = arith.constant 128 : i32
    %33 = vector.broadcast %c128_i32 : i32 to vector<8x16xi32>
    %34 = arith.select %32, %30, %33 : vector<8x16xi1>, vector<8x16xi32>
    %cst_14 = arith.constant dense<2147483647> : vector<8xi32>
    %35 = vector.multi_reduction <minsi>, %34, %cst_14 [1] : vector<8x16xi32> to vector<8xi32>
    %36 = vector.shape_cast %35 : vector<8xi32> to vector<8x1xi32>
    %37 = tpu.iota {dimensions = array<i32: 0>} : vector<16x128xi32>
    %38 = tpu.iota {dimensions = array<i32: 1>} : vector<16x128xi32>
    %39 = arith.cmpi eq, %38, %37 : vector<16x128xi32>
    %40 = arith.extui %39 : vector<16x128xi1> to vector<16x128xi32>
    %41 = arith.sitofp %40 : vector<16x128xi32> to vector<16x128xf32>
    %c16_i32 = arith.constant 16 : i32
    %42 = vector.broadcast %c16_i32 : i32 to vector<16x128xi32>
    %43 = arith.addi %37, %42 : vector<16x128xi32>
    %44 = arith.cmpi eq, %38, %43 : vector<16x128xi32>
    %45 = arith.extui %44 : vector<16x128xi1> to vector<16x128xi32>
    %46 = arith.sitofp %45 : vector<16x128xi32> to vector<16x128xf32>
    %cst_15 = arith.constant dense<0.000000e+00> : vector<8x128xf32>
    %47 = tpu.matmul %22, %41, %cst_15 {dimension_numbers = #tpu.dot_dimension_numbers<[1], [0], [0], [1], [0, 0, 1, 1], [], []>} : vector<8x16xf32>, vector<16x128xf32>, vector<8x128xf32> -> vector<8x128xf32>
    %cst_16 = arith.constant dense<0.000000e+00> : vector<8x128xf32>
    %48 = tpu.matmul %24, %46, %cst_16 {dimension_numbers = #tpu.dot_dimension_numbers<[1], [0], [0], [1], [0, 0, 1, 1], [], []>} : vector<8x16xf32>, vector<16x128xf32>, vector<8x128xf32> -> vector<8x128xf32>
    %49 = arith.addf %47, %48 : vector<8x128xf32>
    %50 = tpu.iota {dimensions = array<i32: 1>} : vector<8x128xi32>
    %c32_i32 = arith.constant 32 : i32
    %51 = vector.broadcast %c32_i32 : i32 to vector<8x128xi32>
    %52 = arith.cmpi eq, %50, %51 : vector<8x128xi32>
    %cst_17 = arith.constant 0.000000e+00 : f32
    %53 = vector.shape_cast %29 : vector<8x1xf32> to vector<8x1xf32>
    %54 = vector.broadcast %53 : vector<8x1xf32> to vector<8x128xf32>
    %55 = vector.broadcast %cst_17 : f32 to vector<8x128xf32>
    %56 = arith.select %52, %54, %55 : vector<8x128xi1>, vector<8x128xf32>
    %57 = arith.addf %49, %56 : vector<8x128xf32>
    %c33_i32 = arith.constant 33 : i32
    %58 = vector.broadcast %c33_i32 : i32 to vector<8x128xi32>
    %59 = arith.cmpi eq, %50, %58 : vector<8x128xi32>
    %cst_18 = arith.constant 0.000000e+00 : f32
    %60 = vector.shape_cast %19 : vector<8x1xf32> to vector<8x1xf32>
    %61 = vector.broadcast %60 : vector<8x1xf32> to vector<8x128xf32>
    %62 = vector.broadcast %cst_18 : f32 to vector<8x128xf32>
    %63 = arith.select %59, %61, %62 : vector<8x128xi1>, vector<8x128xf32>
    %64 = arith.addf %57, %63 : vector<8x128xf32>
    %c34_i32 = arith.constant 34 : i32
    %65 = vector.broadcast %c34_i32 : i32 to vector<8x128xi32>
    %66 = arith.cmpi eq, %50, %65 : vector<8x128xi32>
    %67 = arith.sitofp %36 : vector<8x1xi32> to vector<8x1xf32>
    %cst_19 = arith.constant 0.000000e+00 : f32
    %68 = vector.shape_cast %67 : vector<8x1xf32> to vector<8x1xf32>
    %69 = vector.broadcast %68 : vector<8x1xf32> to vector<8x128xf32>
    %70 = vector.broadcast %cst_19 : f32 to vector<8x128xf32>
    %71 = arith.select %66, %69, %70 : vector<8x128xi1>, vector<8x128xf32>
    %72 = arith.addf %64, %71 : vector<8x128xf32>
    %c0_20 = arith.constant 0 : index
    %c0_21 = arith.constant 0 : index
    %73 = vector.load %arg5[%c0_20, %c0_21] : memref<8x128xf32, #tpu.memory_space<vmem>>, vector<8x128xf32>
    tpu.vector_store %arg5[%c0_20, %c0_21], %72 {strides = array<i32>} : memref<8x128xf32, #tpu.memory_space<vmem>>, vector<8x128xf32>,
    return
  }
}

</mosaic_0001>

<llo_original>
// kernel: forward.1
$region0: #{forward.1}
  #allocation0 [shape = 'u32[]', space=smem, size = 0x4, offset = 0x4, fixed_abs, tag = 'smem constant byte address 0x4 - core index']
  #allocation1 [shape = 'u32[72,128]{1,0:T(1,128)}', space=vmem, size = 0x9000, scoped, tag = 'internal scratch']
  %s0 = inlined_call_operand.vmem [shape: f32[8,1024], index: 0, kind: input, shape index: {}]
  %s1 = inlined_call_operand.vmem [shape: f32[8,1024], index: 1, kind: input, shape index: {}]
  %s2 = inlined_call_operand.vmem [shape: bf16[1024,16], index: 2, kind: input, shape index: {}]
  %s3 = inlined_call_operand.vmem [shape: bf16[1024,16], index: 3, kind: input, shape index: {}]
  %s4 = inlined_call_operand.vmem [shape: f32[1,16], index: 4, kind: input, shape index: {}]
  %s5 = inlined_call_operand.vmem [shape: f32[8,128], index: 5, kind: output, shape index: {}]
  %s6 = sld [smem:[#allocation0]]
  $region30: #{forward.1} parent=0
    _
  %s8 = ssub.s32 1, %s6
  %s9 = scalar_select 0, %s8, %s6
  // Predicated region
  $region2: #{forward.1} parent=0 // pred_check
    _
  $region3: #{forward.1} parent=0 // pred_check_branch
    %11 = sbr.rel (0) target = $region5
  $region4: #{forward.1} parent=0 // pred_region
    _
  $region5: #{forward.1} parent=0 // pred_fallthru
    _
  // Predicated region
  $region6: #{forward.1} parent=0 // pred_check
    _
  $region7: #{forward.1} parent=0 // pred_check_branch
    %13 = sbr.rel (0) target = $region9
  $region8: #{forward.1} parent=0 // pred_region
    _
  $region9: #{forward.1} parent=0 // pred_fallthru
    _
  // Predicated region
  $region10: #{forward.1} parent=0 // pred_check
    _
  $region11: #{forward.1} parent=0 // pred_check_branch
    %15 = sbr.rel (0) target = $region13
  $region12: #{forward.1} parent=0 // pred_region
    _
  $region13: #{forward.1} parent=0 // pred_fallthru
    _
  // Predicated region
  $region14: #{forward.1} parent=0 // pred_check
    _
  $region15: #{forward.1} parent=0 // pred_check_branch
    %17 = sbr.rel (0) target = $region17
  $region16: #{forward.1} parent=0 // pred_region
    _
  $region17: #{forward.1} parent=0 // pred_fallthru
    _
  // Predicated region
  $region18: #{forward.1} parent=0 // pred_check
    _
  $region19: #{forward.1} parent=0 // pred_check_branch
    %19 = sbr.rel (0) target = $region21
  $region20: #{forward.1} parent=0 // pred_region
    _
  $region21: #{forward.1} parent=0 // pred_fallthru
    _
  %v20 = vld [vmem:[%s0] sm:$0xff]
  %v21 = vld [vmem:[%s0 + $0x8] sm:$0xff]
  %v22 = vld [vmem:[%s0 + $0x10] sm:$0xff]
  %v23 = vld [vmem:[%s0 + $0x18] sm:$0xff]
  %v24 = vld [vmem:[%s0 + $0x20] sm:$0xff]
  %v25 = vld [vmem:[%s0 + $0x28] sm:$0xff]
  %v26 = vld [vmem:[%s0 + $0x30] sm:$0xff]
  %v27 = vld [vmem:[%s0 + $0x38] sm:$0xff]
  %v28 = vpack.c.bf16 %v20, %v20
  %v29 = vpack.c.bf16 %v21, %v21
  %v30 = vpack.c.bf16 %v22, %v22
  %v31 = vpack.c.bf16 %v23, %v23
  %v32 = vpack.c.bf16 %v24, %v24
  %v33 = vpack.c.bf16 %v25, %v25
  %v34 = vpack.c.bf16 %v26, %v26
  %v35 = vpack.c.bf16 %v27, %v27
  %v36 = vld [vmem:[%s1] sm:$0xff]
  %v37 = vld [vmem:[%s1 + $0x8] sm:$0xff]
  %v38 = vld [vmem:[%s1 + $0x10] sm:$0xff]
  %v39 = vld [vmem:[%s1 + $0x18] sm:$0xff]
  %v40 = vld [vmem:[%s1 + $0x20] sm:$0xff]
  %v41 = vld [vmem:[%s1 + $0x28] sm:$0xff]
  %v42 = vld [vmem:[%s1 + $0x30] sm:$0xff]
  %v43 = vld [vmem:[%s1 + $0x38] sm:$0xff]
  %v44 = vpack.c.bf16 %v36, %v36
  %v45 = vpack.c.bf16 %v37, %v37
  %v46 = vpack.c.bf16 %v38, %v38
  %v47 = vpack.c.bf16 %v39, %v39
  %v48 = vpack.c.bf16 %v40, %v40
  %v49 = vpack.c.bf16 %v41, %v41
  %v50 = vpack.c.bf16 %v42, %v42
  %v51 = vpack.c.bf16 %v43, %v43
  %v52 = vld [vmem:[%s2] sm:$0xf]
  %v53 = vld [vmem:[%s2 + $0x4] sm:$0xf]
  %v54 = vld [vmem:[%s2 + $0x8] sm:$0xf]
  %v55 = vld [vmem:[%s2 + $0xc] sm:$0xf]
  %v56 = vld [vmem:[%s2 + $0x10] sm:$0xf]
  %v57 = vld [vmem:[%s2 + $0x14] sm:$0xf]
  %v58 = vld [vmem:[%s2 + $0x18] sm:$0xf]
  %v59 = vld [vmem:[%s2 + $0x1c] sm:$0xf]
  %v60 = vld [vmem:[%s2 + $0x20] sm:$0xf]
  %v61 = vld [vmem:[%s2 + $0x24] sm:$0xf]
  %v62 = vld [vmem:[%s2 + $0x28] sm:$0xf]
  %v63 = vld [vmem:[%s2 + $0x2c] sm:$0xf]
  %v64 = vld [vmem:[%s2 + $0x30] sm:$0xf]
  %v65 = vld [vmem:[%s2 + $0x34] sm:$0xf]
  %v66 = vld [vmem:[%s2 + $0x38] sm:$0xf]
  %v67 = vld [vmem:[%s2 + $0x3c] sm:$0xf]
  %v68 = vld [vmem:[%s2 + $0x40] sm:$0xf]
  %v69 = vld [vmem:[%s2 + $0x44] sm:$0xf]
  %v70 = vld [vmem:[%s2 + $0x48] sm:$0xf]
  %v71 = vld [vmem:[%s2 + $0x4c] sm:$0xf]
  %v72 = vld [vmem:[%s2 + $0x50] sm:$0xf]
  %v73 = vld [vmem:[%s2 + $0x54] sm:$0xf]
  %v74 = vld [vmem:[%s2 + $0x58] sm:$0xf]
  %v75 = vld [vmem:[%s2 + $0x5c] sm:$0xf]
  %v76 = vld [vmem:[%s2 + $0x60] sm:$0xf]
  %v77 = vld [vmem:[%s2 + $0x64] sm:$0xf]
  %v78 = vld [vmem:[%s2 + $0x68] sm:$0xf]
  %v79 = vld [vmem:[%s2 + $0x6c] sm:$0xf]
  %v80 = vld [vmem:[%s2 + $0x70] sm:$0xf]
  %v81 = vld [vmem:[%s2 + $0x74] sm:$0xf]
  %v82 = vld [vmem:[%s2 + $0x78] sm:$0xf]
  %v83 = vld [vmem:[%s2 + $0x7c] sm:$0xf]
  %v84 = vld [vmem:[%s2 + $0x80] sm:$0xf]
  %v85 = vld [vmem:[%s2 + $0x84] sm:$0xf]
  %v86 = vld [vmem:[%s2 + $0x88] sm:$0xf]
  %v87 = vld [vmem:[%s2 + $0x8c] sm:$0xf]
  %v88 = vld [vmem:[%s2 + $0x90] sm:$0xf]
  %v89 = vld [vmem:[%s2 + $0x94] sm:$0xf]
  %v90 = vld [vmem:[%s2 + $0x98] sm:$0xf]
  %v91 = vld [vmem:[%s2 + $0x9c] sm:$0xf]
  %v92 = vld [vmem:[%s2 + $0xa0] sm:$0xf]
  %v93 = vld [vmem:[%s2 + $0xa4] sm:$0xf]
  %v94 = vld [vmem:[%s2 + $0xa8] sm:$0xf]
  %v95 = vld [vmem:[%s2 + $0xac] sm:$0xf]
  %v96 = vld [vmem:[%s2 + $0xb0] sm:$0xf]
  %v97 = vld [vmem:[%s2 + $0xb4] sm:$0xf]
  %v98 = vld [vmem:[%s2 + $0xb8] sm:$0xf]
  %v99 = vld [vmem:[%s2 + $0xbc] sm:$0xf]
  %v100 = vld [vmem:[%s2 + $0xc0] sm:$0xf]
  %v101 = vld [vmem:[%s2 + $0xc4] sm:$0xf]
  %v102 = vld [vmem:[%s2 + $0xc8] sm:$0xf]
  %v103 = vld [vmem:[%s2 + $0xcc] sm:$0xf]
  %v104 = vld [vmem:[%s2 + $0xd0] sm:$0xf]
  %v105 = vld [vmem:[%s2 + $0xd4] sm:$0xf]
  %v106 = vld [vmem:[%s2 + $0xd8] sm:$0xf]
  %v107 = vld [vmem:[%s2 + $0xdc] sm:$0xf]
  %v108 = vld [vmem:[%s2 + $0xe0] sm:$0xf]
  %v109 = vld [vmem:[%s2 + $0xe4] sm:$0xf]
  %v110 = vld [vmem:[%s2 + $0xe8] sm:$0xf]
  %v111 = vld [vmem:[%s2 + $0xec] sm:$0xf]
  %v112 = vld [vmem:[%s2 + $0xf0] sm:$0xf]
  %v113 = vld [vmem:[%s2 + $0xf4] sm:$0xf]
  %v114 = vld [vmem:[%s2 + $0xf8] sm:$0xf]
  %v115 = vld [vmem:[%s2 + $0xfc] sm:$0xf]
  %v116 = vld [vmem:[%s2 + $0x100] sm:$0xf]
  %v117 = vld [vmem:[%s2 + $0x104] sm:$0xf]
  %v118 = vld [vmem:[%s2 + $0x108] sm:$0xf]
  %v119 = vld [vmem:[%s2 + $0x10c] sm:$0xf]
  %v120 = vld [vmem:[%s2 + $0x110] sm:$0xf]
  %v121 = vld [vmem:[%s2 + $0x114] sm:$0xf]
  %v122 = vld [vmem:[%s2 + $0x118] sm:$0xf]
  %v123 = vld [vmem:[%s2 + $0x11c] sm:$0xf]
  %v124 = vld [vmem:[%s2 + $0x120] sm:$0xf]
  %v125 = vld [vmem:[%s2 + $0x124] sm:$0xf]
  %v126 = vld [vmem:[%s2 + $0x128] sm:$0xf]
  %v127 = vld [vmem:[%s2 + $0x12c] sm:$0xf]
  %v128 = vld [vmem:[%s2 + $0x130] sm:$0xf]
  %v129 = vld [vmem:[%s2 + $0x134] sm:$0xf]
  %v130 = vld [vmem:[%s2 + $0x138] sm:$0xf]
  %v131 = vld [vmem:[%s2 + $0x13c] sm:$0xf]
  %v132 = vld [vmem:[%s2 + $0x140] sm:$0xf]
  %v133 = vld [vmem:[%s2 + $0x144] sm:$0xf]
  %v134 = vld [vmem:[%s2 + $0x148] sm:$0xf]
  %v135 = vld [vmem:[%s2 + $0x14c] sm:$0xf]
  %v136 = vld [vmem:[%s2 + $0x150] sm:$0xf]
  %v137 = vld [vmem:[%s2 + $0x154] sm:$0xf]
  %v138 = vld [vmem:[%s2 + $0x158] sm:$0xf]
  %v139 = vld [vmem:[%s2 + $0x15c] sm:$0xf]
  %v140 = vld [vmem:[%s2 + $0x160] sm:$0xf]
  %v141 = vld [vmem:[%s2 + $0x164] sm:$0xf]
  %v142 = vld [vmem:[%s2 + $0x168] sm:$0xf]
  %v143 = vld [vmem:[%s2 + $0x16c] sm:$0xf]
  %v144 = vld [vmem:[%s2 + $0x170] sm:$0xf]
  %v145 = vld [vmem:[%s2 + $0x174] sm:$0xf]
  %v146 = vld [vmem:[%s2 + $0x178] sm:$0xf]
  %v147 = vld [vmem:[%s2 + $0x17c] sm:$0xf]
  %v148 = vld [vmem:[%s2 + $0x180] sm:$0xf]
  %v149 = vld [vmem:[%s2 + $0x184] sm:$0xf]
  %v150 = vld [vmem:[%s2 + $0x188] sm:$0xf]
  %v151 = vld [vmem:[%s2 + $0x18c] sm:$0xf]
  %v152 = vld [vmem:[%s2 + $0x190] sm:$0xf]
  %v153 = vld [vmem:[%s2 + $0x194] sm:$0xf]
  %v154 = vld [vmem:[%s2 + $0x198] sm:$0xf]
  %v155 = vld [vmem:[%s2 + $0x19c] sm:$0xf]
  %v156 = vld [vmem:[%s2 + $0x1a0] sm:$0xf]
  %v157 = vld [vmem:[%s2 + $0x1a4] sm:$0xf]
  %v158 = vld [vmem:[%s2 + $0x1a8] sm:$0xf]
  %v159 = vld [vmem:[%s2 + $0x1ac] sm:$0xf]
  %v160 = vld [vmem:[%s2 + $0x1b0] sm:$0xf]
  %v161 = vld [vmem:[%s2 + $0x1b4] sm:$0xf]
  %v162 = vld [vmem:[%s2 + $0x1b8] sm:$0xf]
  %v163 = vld [vmem:[%s2 + $0x1bc] sm:$0xf]
  %v164 = vld [vmem:[%s2 + $0x1c0] sm:$0xf]
  %v165 = vld [vmem:[%s2 + $0x1c4] sm:$0xf]
  %v166 = vld [vmem:[%s2 + $0x1c8] sm:$0xf]
  %v167 = vld [vmem:[%s2 + $0x1cc] sm:$0xf]
  %v168 = vld [vmem:[%s2 + $0x1d0] sm:$0xf]
  %v169 = vld [vmem:[%s2 + $0x1d4] sm:$0xf]
  %v170 = vld [vmem:[%s2 + $0x1d8] sm:$0xf]
  %v171 = vld [vmem:[%s2 + $0x1dc] sm:$0xf]
  %v172 = vld [vmem:[%s2 + $0x1e0] sm:$0xf]
  %v173 = vld [vmem:[%s2 + $0x1e4] sm:$0xf]
  %v174 = vld [vmem:[%s2 + $0x1e8] sm:$0xf]
  %v175 = vld [vmem:[%s2 + $0x1ec] sm:$0xf]
  %v176 = vld [vmem:[%s2 + $0x1f0] sm:$0xf]
  %v177 = vld [vmem:[%s2 + $0x1f4] sm:$0xf]
  %v178 = vld [vmem:[%s2 + $0x1f8] sm:$0xf]
  %v179 = vld [vmem:[%s2 + $0x1fc] sm:$0xf]
  %v180 = vld [vmem:[%s3] sm:$0xf]
  %v181 = vld [vmem:[%s3 + $0x4] sm:$0xf]
  %v182 = vld [vmem:[%s3 + $0x8] sm:$0xf]
  %v183 = vld [vmem:[%s3 + $0xc] sm:$0xf]
  %v184 = vld [vmem:[%s3 + $0x10] sm:$0xf]
  %v185 = vld [vmem:[%s3 + $0x14] sm:$0xf]
  %v186 = vld [vmem:[%s3 + $0x18] sm:$0xf]
  %v187 = vld [vmem:[%s3 + $0x1c] sm:$0xf]
  %v188 = vld [vmem:[%s3 + $0x20] sm:$0xf]
  %v189 = vld [vmem:[%s3 + $0x24] sm:$0xf]
  %v190 = vld [vmem:[%s3 + $0x28] sm:$0xf]
  %v191 = vld [vmem:[%s3 + $0x2c] sm:$0xf]
  %v192 = vld [vmem:[%s3 + $0x30] sm:$0xf]
  %v193 = vld [vmem:[%s3 + $0x34] sm:$0xf]
  %v194 = vld [vmem:[%s3 + $0x38] sm:$0xf]
  %v195 = vld [vmem:[%s3 + $0x3c] sm:$0xf]
  %v196 = vld [vmem:[%s3 + $0x40] sm:$0xf]
  %v197 = vld [vmem:[%s3 + $0x44] sm:$0xf]
  %v198 = vld [vmem:[%s3 + $0x48] sm:$0xf]
  %v199 = vld [vmem:[%s3 + $0x4c] sm:$0xf]
  %v200 = vld [vmem:[%s3 + $0x50] sm:$0xf]
  %v201 = vld [vmem:[%s3 + $0x54] sm:$0xf]
  %v202 = vld [vmem:[%s3 + $0x58] sm:$0xf]
  %v203 = vld [vmem:[%s3 + $0x5c] sm:$0xf]
  %v204 = vld [vmem:[%s3 + $0x60] sm:$0xf]
  %v205 = vld [vmem:[%s3 + $0x64] sm:$0xf]
  %v206 = vld [vmem:[%s3 + $0x68] sm:$0xf]
  %v207 = vld [vmem:[%s3 + $0x6c] sm:$0xf]
  %v208 = vld [vmem:[%s3 + $0x70] sm:$0xf]
  %v209 = vld [vmem:[%s3 + $0x74] sm:$0xf]
  %v210 = vld [vmem:[%s3 + $0x78] sm:$0xf]
  %v211 = vld [vmem:[%s3 + $0x7c] sm:$0xf]
  %v212 = vld [vmem:[%s3 + $0x80] sm:$0xf]
  %v213 = vld [vmem:[%s3 + $0x84] sm:$0xf]
  %v214 = vld [vmem:[%s3 + $0x88] sm:$0xf]
  %v215 = vld [vmem:[%s3 + $0x8c] sm:$0xf]
  %v216 = vld [vmem:[%s3 + $0x90] sm:$0xf]
  %v217 = vld [vmem:[%s3 + $0x94] sm:$0xf]
  %v218 = vld [vmem:[%s3 + $0x98] sm:$0xf]
  %v219 = vld [vmem:[%s3 + $0x9c] sm:$0xf]
  %v220 = vld [vmem:[%s3 + $0xa0] sm:$0xf]
  %v221 = vld [vmem:[%s3 + $0xa4] sm:$0xf]
  %v222 = vld [vmem:[%s3 + $0xa8] sm:$0xf]
  %v223 = vld [vmem:[%s3 + $0xac] sm:$0xf]
  %v224 = vld [vmem:[%s3 + $0xb0] sm:$0xf]
  %v225 = vld [vmem:[%s3 + $0xb4] sm:$0xf]
  %v226 = vld [vmem:[%s3 + $0xb8] sm:$0xf]
  %v227 = vld [vmem:[%s3 + $0xbc] sm:$0xf]
  %v228 = vld [vmem:[%s3 + $0xc0] sm:$0xf]
  %v229 = vld [vmem:[%s3 + $0xc4] sm:$0xf]
  %v230 = vld [vmem:[%s3 + $0xc8] sm:$0xf]
  %v231 = vld [vmem:[%s3 + $0xcc] sm:$0xf]
  %v232 = vld [vmem:[%s3 + $0xd0] sm:$0xf]
  %v233 = vld [vmem:[%s3 + $0xd4] sm:$0xf]
  %v234 = vld [vmem:[%s3 + $0xd8] sm:$0xf]
  %v235 = vld [vmem:[%s3 + $0xdc] sm:$0xf]
  %v236 = vld [vmem:[%s3 + $0xe0] sm:$0xf]
  %v237 = vld [vmem:[%s3 + $0xe4] sm:$0xf]
  %v238 = vld [vmem:[%s3 + $0xe8] sm:$0xf]
  %v239 = vld [vmem:[%s3 + $0xec] sm:$0xf]
  %v240 = vld [vmem:[%s3 + $0xf0] sm:$0xf]
  %v241 = vld [vmem:[%s3 + $0xf4] sm:$0xf]
  %v242 = vld [vmem:[%s3 + $0xf8] sm:$0xf]
  %v243 = vld [vmem:[%s3 + $0xfc] sm:$0xf]
  %v244 = vld [vmem:[%s3 + $0x100] sm:$0xf]
  %v245 = vld [vmem:[%s3 + $0x104] sm:$0xf]
  %v246 = vld [vmem:[%s3 + $0x108] sm:$0xf]
  %v247 = vld [vmem:[%s3 + $0x10c] sm:$0xf]
  %v248 = vld [vmem:[%s3 + $0x110] sm:$0xf]
  %v249 = vld [vmem:[%s3 + $0x114] sm:$0xf]
  %v250 = vld [vmem:[%s3 + $0x118] sm:$0xf]
  %v251 = vld [vmem:[%s3 + $0x11c] sm:$0xf]
  %v252 = vld [vmem:[%s3 + $0x120] sm:$0xf]
  %v253 = vld [vmem:[%s3 + $0x124] sm:$0xf]
  %v254 = vld [vmem:[%s3 + $0x128] sm:$0xf]
  %v255 = vld [vmem:[%s3 + $0x12c] sm:$0xf]
  %v256 = vld [vmem:[%s3 + $0x130] sm:$0xf]
  %v257 = vld [vmem:[%s3 + $0x134] sm:$0xf]
  %v258 = vld [vmem:[%s3 + $0x138] sm:$0xf]
  %v259 = vld [vmem:[%s3 + $0x13c] sm:$0xf]
  %v260 = vld [vmem:[%s3 + $0x140] sm:$0xf]
  %v261 = vld [vmem:[%s3 + $0x144] sm:$0xf]
  %v262 = vld [vmem:[%s3 + $0x148] sm:$0xf]
  %v263 = vld [vmem:[%s3 + $0x14c] sm:$0xf]
  %v264 = vld [vmem:[%s3 + $0x150] sm:$0xf]
  %v265 = vld [vmem:[%s3 + $0x154] sm:$0xf]
  %v266 = vld [vmem:[%s3 + $0x158] sm:$0xf]
  %v267 = vld [vmem:[%s3 + $0x15c] sm:$0xf]
  %v268 = vld [vmem:[%s3 + $0x160] sm:$0xf]
  %v269 = vld [vmem:[%s3 + $0x164] sm:$0xf]
  %v270 = vld [vmem:[%s3 + $0x168] sm:$0xf]
  %v271 = vld [vmem:[%s3 + $0x16c] sm:$0xf]
  %v272 = vld [vmem:[%s3 + $0x170] sm:$0xf]
  %v273 = vld [vmem:[%s3 + $0x174] sm:$0xf]
  %v274 = vld [vmem:[%s3 + $0x178] sm:$0xf]
  %v275 = vld [vmem:[%s3 + $0x17c] sm:$0xf]
  %v276 = vld [vmem:[%s3 + $0x180] sm:$0xf]
  %v277 = vld [vmem:[%s3 + $0x184] sm:$0xf]
  %v278 = vld [vmem:[%s3 + $0x188] sm:$0xf]
  %v279 = vld [vmem:[%s3 + $0x18c] sm:$0xf]
  %v280 = vld [vmem:[%s3 + $0x190] sm:$0xf]
  %v281 = vld [vmem:[%s3 + $0x194] sm:$0xf]
  %v282 = vld [vmem:[%s3 + $0x198] sm:$0xf]
  %v283 = vld [vmem:[%s3 + $0x19c] sm:$0xf]
  %v284 = vld [vmem:[%s3 + $0x1a0] sm:$0xf]
  %v285 = vld [vmem:[%s3 + $0x1a4] sm:$0xf]
  %v286 = vld [vmem:[%s3 + $0x1a8] sm:$0xf]
  %v287 = vld [vmem:[%s3 + $0x1ac] sm:$0xf]
  %v288 = vld [vmem:[%s3 + $0x1b0] sm:$0xf]
  %v289 = vld [vmem:[%s3 + $0x1b4] sm:$0xf]
  %v290 = vld [vmem:[%s3 + $0x1b8] sm:$0xf]
  %v291 = vld [vmem:[%s3 + $0x1bc] sm:$0xf]
  %v292 = vld [vmem:[%s3 + $0x1c0] sm:$0xf]
  %v293 = vld [vmem:[%s3 + $0x1c4] sm:$0xf]
  %v294 = vld [vmem:[%s3 + $0x1c8] sm:$0xf]
  %v295 = vld [vmem:[%s3 + $0x1cc] sm:$0xf]
  %v296 = vld [vmem:[%s3 + $0x1d0] sm:$0xf]
  %v297 = vld [vmem:[%s3 + $0x1d4] sm:$0xf]
  %v298 = vld [vmem:[%s3 + $0x1d8] sm:$0xf]
  %v299 = vld [vmem:[%s3 + $0x1dc] sm:$0xf]
  %v300 = vld [vmem:[%s3 + $0x1e0] sm:$0xf]
  %v301 = vld [vmem:[%s3 + $0x1e4] sm:$0xf]
  %v302 = vld [vmem:[%s3 + $0x1e8] sm:$0xf]
  %v303 = vld [vmem:[%s3 + $0x1ec] sm:$0xf]
  %v304 = vld [vmem:[%s3 + $0x1f0] sm:$0xf]
  %v305 = vld [vmem:[%s3 + $0x1f4] sm:$0xf]
  %v306 = vld [vmem:[%s3 + $0x1f8] sm:$0xf]
  %v307 = vld [vmem:[%s3 + $0x1fc] sm:$0xf]
  %v436 = vunpack.c.l.b16 %v180
  %v437 = vunpack.c.l.b16 %v181
  %v438 = vunpack.c.l.b16 %v182
  %v439 = vunpack.c.l.b16 %v183
  %v440 = vunpack.c.l.b16 %v184
  %v441 = vunpack.c.l.b16 %v185
  %v442 = vunpack.c.l.b16 %v186
  %v443 = vunpack.c.l.b16 %v187
  %v444 = vunpack.c.l.b16 %v188
  %v445 = vunpack.c.l.b16 %v189
  %v446 = vunpack.c.l.b16 %v190
  %v447 = vunpack.c.l.b16 %v191
  %v448 = vunpack.c.l.b16 %v192
  %v449 = vunpack.c.l.b16 %v193
  %v450 = vunpack.c.l.b16 %v194
  %v451 = vunpack.c.l.b16 %v195
  %v452 = vunpack.c.l.b16 %v196
  %v453 = vunpack.c.l.b16 %v197
  %v454 = vunpack.c.l.b16 %v198
  %v455 = vunpack.c.l.b16 %v199
  %v456 = vunpack.c.l.b16 %v200
  %v457 = vunpack.c.l.b16 %v201
  %v458 = vunpack.c.l.b16 %v202
  %v459 = vunpack.c.l.b16 %v203
  %v460 = vunpack.c.l.b16 %v204
  %v461 = vunpack.c.l.b16 %v205
  %v462 = vunpack.c.l.b16 %v206
  %v463 = vunpack.c.l.b16 %v207
  %v464 = vunpack.c.l.b16 %v208
  %v465 = vunpack.c.l.b16 %v209
  %v466 = vunpack.c.l.b16 %v210
  %v467 = vunpack.c.l.b16 %v211
  %v468 = vunpack.c.l.b16 %v212
  %v469 = vunpack.c.l.b16 %v213
  %v470 = vunpack.c.l.b16 %v214
  %v471 = vunpack.c.l.b16 %v215
  %v472 = vunpack.c.l.b16 %v216
  %v473 = vunpack.c.l.b16 %v217
  %v474 = vunpack.c.l.b16 %v218
  %v475 = vunpack.c.l.b16 %v219
  %v476 = vunpack.c.l.b16 %v220
  %v477 = vunpack.c.l.b16 %v221
  %v478 = vunpack.c.l.b16 %v222
  %v479 = vunpack.c.l.b16 %v223
  %v480 = vunpack.c.l.b16 %v224
  %v481 = vunpack.c.l.b16 %v225
  %v482 = vunpack.c.l.b16 %v226
  %v483 = vunpack.c.l.b16 %v227
  %v484 = vunpack.c.l.b16 %v228
  %v485 = vunpack.c.l.b16 %v229
  %v486 = vunpack.c.l.b16 %v230
  %v487 = vunpack.c.l.b16 %v231
  %v488 = vunpack.c.l.b16 %v232
  %v489 = vunpack.c.l.b16 %v233
  %v490 = vunpack.c.l.b16 %v234
  %v491 = vunpack.c.l.b16 %v235
  %v492 = vunpack.c.l.b16 %v236
  %v493 = vunpack.c.l.b16 %v237
  %v494 = vunpack.c.l.b16 %v238
  %v495 = vunpack.c.l.b16 %v239
  %v496 = vunpack.c.l.b16 %v240
  %v497 = vunpack.c.l.b16 %v241
  %v498 = vunpack.c.l.b16 %v242
  %v499 = vunpack.c.l.b16 %v243
  %v500 = vunpack.c.l.b16 %v244
  %v501 = vunpack.c.l.b16 %v245
  %v502 = vunpack.c.l.b16 %v246
  %v503 = vunpack.c.l.b16 %v247
  %v504 = vunpack.c.l.b16 %v248
  %v505 = vunpack.c.l.b16 %v249
  %v506 = vunpack.c.l.b16 %v250
  %v507 = vunpack.c.l.b16 %v251
  %v508 = vunpack.c.l.b16 %v252
  %v509 = vunpack.c.l.b16 %v253
  %v510 = vunpack.c.l.b16 %v254
  %v511 = vunpack.c.l.b16 %v255
  %v512 = vunpack.c.l.b16 %v256
  %v513 = vunpack.c.l.b16 %v257
  %v514 = vunpack.c.l.b16 %v258
  %v515 = vunpack.c.l.b16 %v259
  %v516 = vunpack.c.l.b16 %v260
  %v517 = vunpack.c.l.b16 %v261
  %v518 = vunpack.c.l.b16 %v262
  %v519 = vunpack.c.l.b16 %v263
  %v520 = vunpack.c.l.b16 %v264
  %v521 = vunpack.c.l.b16 %v265
  %v522 = vunpack.c.l.b16 %v266
  %v523 = vunpack.c.l.b16 %v267
  %v524 = vunpack.c.l.b16 %v268
  %v525 = vunpack.c.l.b16 %v269
  %v526 = vunpack.c.l.b16 %v270
  %v527 = vunpack.c.l.b16 %v271
  %v528 = vunpack.c.l.b16 %v272
  %v529 = vunpack.c.l.b16 %v273
  %v530 = vunpack.c.l.b16 %v274
  %v531 = vunpack.c.l.b16 %v275
  %v532 = vunpack.c.l.b16 %v276
  %v533 = vunpack.c.l.b16 %v277
  %v534 = vunpack.c.l.b16 %v278
  %v535 = vunpack.c.l.b16 %v279
  %v536 = vunpack.c.l.b16 %v280
  %v537 = vunpack.c.l.b16 %v281
  %v538 = vunpack.c.l.b16 %v282
  %v539 = vunpack.c.l.b16 %v283
  %v540 = vunpack.c.l.b16 %v284
  %v541 = vunpack.c.l.b16 %v285
  %v542 = vunpack.c.l.b16 %v286
  %v543 = vunpack.c.l.b16 %v287
  %v544 = vunpack.c.l.b16 %v288
  %v545 = vunpack.c.l.b16 %v289
  %v546 = vunpack.c.l.b16 %v290
  %v547 = vunpack.c.l.b16 %v291
  %v548 = vunpack.c.l.b16 %v292
  %v549 = vunpack.c.l.b16 %v293
  %v550 = vunpack.c.l.b16 %v294
  %v551 = vunpack.c.l.b16 %v295
  %v552 = vunpack.c.l.b16 %v296
  %v553 = vunpack.c.l.b16 %v297
  %v554 = vunpack.c.l.b16 %v298
  %v555 = vunpack.c.l.b16 %v299
  %v556 = vunpack.c.l.b16 %v300
  %v557 = vunpack.c.l.b16 %v301
  %v558 = vunpack.c.l.b16 %v302
  %v559 = vunpack.c.l.b16 %v303
  %v560 = vunpack.c.l.b16 %v304
  %v561 = vunpack.c.l.b16 %v305
  %v562 = vunpack.c.l.b16 %v306
  %v563 = vunpack.c.l.b16 %v307
  %v564 = vpack.c.b16 %v437, %v436
  %v565 = vpack.c.b16 %v439, %v438
  %v566 = vpack.c.b16 %v441, %v440
  %v567 = vpack.c.b16 %v443, %v442
  %v568 = vpack.c.b16 %v445, %v444
  %v569 = vpack.c.b16 %v447, %v446
  %v570 = vpack.c.b16 %v449, %v448
  %v571 = vpack.c.b16 %v451, %v450
  %v572 = vpack.c.b16 %v453, %v452
  %v573 = vpack.c.b16 %v455, %v454
  %v574 = vpack.c.b16 %v457, %v456
  %v575 = vpack.c.b16 %v459, %v458
  %v576 = vpack.c.b16 %v461, %v460
  %v577 = vpack.c.b16 %v463, %v462
  %v578 = vpack.c.b16 %v465, %v464
  %v579 = vpack.c.b16 %v467, %v466
  %v580 = vpack.c.b16 %v469, %v468
  %v581 = vpack.c.b16 %v471, %v470
  %v582 = vpack.c.b16 %v473, %v472
  %v583 = vpack.c.b16 %v475, %v474
  %v584 = vpack.c.b16 %v477, %v476
  %v585 = vpack.c.b16 %v479, %v478
  %v586 = vpack.c.b16 %v481, %v480
  %v587 = vpack.c.b16 %v483, %v482
  %v588 = vpack.c.b16 %v485, %v484
  %v589 = vpack.c.b16 %v487, %v486
  %v590 = vpack.c.b16 %v489, %v488
  %v591 = vpack.c.b16 %v491, %v490
  %v592 = vpack.c.b16 %v493, %v492
  %v593 = vpack.c.b16 %v495, %v494
  %v594 = vpack.c.b16 %v497, %v496
  %v595 = vpack.c.b16 %v499, %v498
  %v596 = vpack.c.b16 %v501, %v500
  %v597 = vpack.c.b16 %v503, %v502
  %v598 = vpack.c.b16 %v505, %v504
  %v599 = vpack.c.b16 %v507, %v506
  %v600 = vpack.c.b16 %v509, %v508
  %v601 = vpack.c.b16 %v511, %v510
  %v602 = vpack.c.b16 %v513, %v512
  %v603 = vpack.c.b16 %v515, %v514
  %v604 = vpack.c.b16 %v517, %v516
  %v605 = vpack.c.b16 %v519, %v518
  %v606 = vpack.c.b16 %v521, %v520
  %v607 = vpack.c.b16 %v523, %v522
  %v608 = vpack.c.b16 %v525, %v524
  %v609 = vpack.c.b16 %v527, %v526
  %v610 = vpack.c.b16 %v529, %v528
  %v611 = vpack.c.b16 %v531, %v530
  %v612 = vpack.c.b16 %v533, %v532
  %v613 = vpack.c.b16 %v535, %v534
  %v614 = vpack.c.b16 %v537, %v536
  %v615 = vpack.c.b16 %v539, %v538
  %v616 = vpack.c.b16 %v541, %v540
  %v617 = vpack.c.b16 %v543, %v542
  %v618 = vpack.c.b16 %v545, %v544
  %v619 = vpack.c.b16 %v547, %v546
  %v620 = vpack.c.b16 %v549, %v548
  %v621 = vpack.c.b16 %v551, %v550
  %v622 = vpack.c.b16 %v553, %v552
  %v623 = vpack.c.b16 %v555, %v554
  %v624 = vpack.c.b16 %v557, %v556
  %v625 = vpack.c.b16 %v559, %v558
  %v626 = vpack.c.b16 %v561, %v560
  %v627 = vpack.c.b16 %v563, %v562
  %692 = vmatpush.bf16.msra.mxu0 %v571
  %693 = vmatpush.bf16.msra.mxu0 %v570
  %694 = vmatpush.bf16.msra.mxu0 %v569
  %695 = vmatpush.bf16.msra.mxu0 %v568
  %696 = vmatpush.bf16.msra.mxu0 %v567
  %697 = vmatpush.bf16.msra.mxu0 %v566
  %698 = vmatpush.bf16.msra.mxu0 %v565
  %699 = vmatpush.bf16.msra.mxu0 %v564
  %700 = vmatmul.bf16.gmra.mxu0 %v44
  %v701 = vpop.f32.mrf.mxu0
  %v702 = vadd.f32 0.0, %v701
  %v703 = vpop.f32.mrf.mxu0
  %704 = vdwg.mxu0
  %705 = vmatpush.bf16.msra.mxu0 %v579
  %706 = vmatpush.bf16.msra.mxu0 %v578
  %707 = vmatpush.bf16.msra.mxu0 %v577
  %708 = vmatpush.bf16.msra.mxu0 %v576
  %709 = vmatpush.bf16.msra.mxu0 %v575
  %710 = vmatpush.bf16.msra.mxu0 %v574
  %711 = vmatpush.bf16.msra.mxu0 %v573
  %712 = vmatpush.bf16.msra.mxu0 %v572
  %713 = vmatmul.bf16.gmra.mxu0 %v45
  %v714 = vpop.f32.mrf.mxu0
  %v715 = vadd.f32 %v702, %v714
  %v716 = vpop.f32.mrf.mxu0
  %717 = vdwg.mxu0
  %718 = vmatpush.bf16.msra.mxu0 %v587
  %719 = vmatpush.bf16.msra.mxu0 %v586
  %720 = vmatpush.bf16.msra.mxu0 %v585
  %721 = vmatpush.bf16.msra.mxu0 %v584
  %722 = vmatpush.bf16.msra.mxu0 %v583
  %723 = vmatpush.bf16.msra.mxu0 %v582
  %724 = vmatpush.bf16.msra.mxu0 %v581
  %725 = vmatpush.bf16.msra.mxu0 %v580
  %726 = vmatmul.bf16.gmra.mxu0 %v46
  %v727 = vpop.f32.mrf.mxu0
  %v728 = vadd.f32 %v715, %v727
  %v729 = vpop.f32.mrf.mxu0
  %730 = vdwg.mxu0
  %731 = vmatpush.bf16.msra.mxu0 %v595
  %732 = vmatpush.bf16.msra.mxu0 %v594
  %733 = vmatpush.bf16.msra.mxu0 %v593
  %734 = vmatpush.bf16.msra.mxu0 %v592
  %735 = vmatpush.bf16.msra.mxu0 %v591
  %736 = vmatpush.bf16.msra.mxu0 %v590
  %737 = vmatpush.bf16.msra.mxu0 %v589
  %738 = vmatpush.bf16.msra.mxu0 %v588
  %739 = vmatmul.bf16.gmra.mxu0 %v47
  %v740 = vpop.f32.mrf.mxu0
  %v741 = vadd.f32 %v728, %v740
  %v742 = vpop.f32.mrf.mxu0
  %743 = vdwg.mxu0
  %744 = vmatpush.bf16.msra.mxu0 %v603
  %745 = vmatpush.bf16.msra.mxu0 %v602
  %746 = vmatpush.bf16.msra.mxu0 %v601
  %747 = vmatpush.bf16.msra.mxu0 %v600
  %748 = vmatpush.bf16.msra.mxu0 %v599
  %749 = vmatpush.bf16.msra.mxu0 %v598
  %750 = vmatpush.bf16.msra.mxu0 %v597
  %751 = vmatpush.bf16.msra.mxu0 %v596
  %752 = vmatmul.bf16.gmra.mxu0 %v48
  %v753 = vpop.f32.mrf.mxu0
  %v754 = vadd.f32 %v741, %v753
  %v755 = vpop.f32.mrf.mxu0
  %756 = vdwg.mxu0
  %757 = vmatpush.bf16.msra.mxu0 %v611
  %758 = vmatpush.bf16.msra.mxu0 %v610
  %759 = vmatpush.bf16.msra.mxu0 %v609
  %760 = vmatpush.bf16.msra.mxu0 %v608
  %761 = vmatpush.bf16.msra.mxu0 %v607
  %762 = vmatpush.bf16.msra.mxu0 %v606
  %763 = vmatpush.bf16.msra.mxu0 %v605
  %764 = vmatpush.bf16.msra.mxu0 %v604
  %765 = vmatmul.bf16.gmra.mxu0 %v49
  %v766 = vpop.f32.mrf.mxu0
  %v767 = vadd.f32 %v754, %v766
  %v768 = vpop.f32.mrf.mxu0
  %769 = vdwg.mxu0
  %770 = vmatpush.bf16.msra.mxu0 %v619
  %771 = vmatpush.bf16.msra.mxu0 %v618
  %772 = vmatpush.bf16.msra.mxu0 %v617
  %773 = vmatpush.bf16.msra.mxu0 %v616
  %774 = vmatpush.bf16.msra.mxu0 %v615
  %775 = vmatpush.bf16.msra.mxu0 %v614
  %776 = vmatpush.bf16.msra.mxu0 %v613
  %777 = vmatpush.bf16.msra.mxu0 %v612
  %778 = vmatmul.bf16.gmra.mxu0 %v50
  %v779 = vpop.f32.mrf.mxu0
  %v780 = vadd.f32 %v767, %v779
  %v781 = vpop.f32.mrf.mxu0
  %782 = vdwg.mxu0
  %783 = vmatpush.bf16.msra.mxu0 %v627
  %784 = vmatpush.bf16.msra.mxu0 %v626
  %785 = vmatpush.bf16.msra.mxu0 %v625
  %786 = vmatpush.bf16.msra.mxu0 %v624
  %787 = vmatpush.bf16.msra.mxu0 %v623
  %788 = vmatpush.bf16.msra.mxu0 %v622
  %789 = vmatpush.bf16.msra.mxu0 %v621
  %790 = vmatpush.bf16.msra.mxu0 %v620
  %791 = vmatmul.bf16.gmra.mxu0 %v51
  %v792 = vpop.f32.mrf.mxu0
  %v793 = vadd.f32 %v780, %v792
  %v794 = vpop.f32.mrf.mxu0
  %795 = vdwg.mxu0
  %v924 = vunpack.c.l.b16 %v52
  %v925 = vunpack.c.l.b16 %v53
  %v926 = vunpack.c.l.b16 %v54
  %v927 = vunpack.c.l.b16 %v55
  %v928 = vunpack.c.l.b16 %v56
  %v929 = vunpack.c.l.b16 %v57
  %v930 = vunpack.c.l.b16 %v58
  %v931 = vunpack.c.l.b16 %v59
  %v932 = vunpack.c.l.b16 %v60
  %v933 = vunpack.c.l.b16 %v61
  %v934 = vunpack.c.l.b16 %v62
  %v935 = vunpack.c.l.b16 %v63
  %v936 = vunpack.c.l.b16 %v64
  %v937 = vunpack.c.l.b16 %v65
  %v938 = vunpack.c.l.b16 %v66
  %v939 = vunpack.c.l.b16 %v67
  %v940 = vunpack.c.l.b16 %v68
  %v941 = vunpack.c.l.b16 %v69
  %v942 = vunpack.c.l.b16 %v70
  %v943 = vunpack.c.l.b16 %v71
  %v944 = vunpack.c.l.b16 %v72
  %v945 = vunpack.c.l.b16 %v73
  %v946 = vunpack.c.l.b16 %v74
  %v947 = vunpack.c.l.b16 %v75
  %v948 = vunpack.c.l.b16 %v76
  %v949 = vunpack.c.l.b16 %v77
  %v950 = vunpack.c.l.b16 %v78
  %v951 = vunpack.c.l.b16 %v79
  %v952 = vunpack.c.l.b16 %v80
  %v953 = vunpack.c.l.b16 %v81
  %v954 = vunpack.c.l.b16 %v82
  %v955 = vunpack.c.l.b16 %v83
  %v956 = vunpack.c.l.b16 %v84
  %v957 = vunpack.c.l.b16 %v85
  %v958 = vunpack.c.l.b16 %v86
  %v959 = vunpack.c.l.b16 %v87
  %v960 = vunpack.c.l.b16 %v88
  %v961 = vunpack.c.l.b16 %v89
  %v962 = vunpack.c.l.b16 %v90
  %v963 = vunpack.c.l.b16 %v91
  %v964 = vunpack.c.l.b16 %v92
  %v965 = vunpack.c.l.b16 %v93
  %v966 = vunpack.c.l.b16 %v94
  %v967 = vunpack.c.l.b16 %v95
  %v968 = vunpack.c.l.b16 %v96
  %v969 = vunpack.c.l.b16 %v97
  %v970 = vunpack.c.l.b16 %v98
  %v971 = vunpack.c.l.b16 %v99
  %v972 = vunpack.c.l.b16 %v100
  %v973 = vunpack.c.l.b16 %v101
  %v974 = vunpack.c.l.b16 %v102
  %v975 = vunpack.c.l.b16 %v103
  %v976 = vunpack.c.l.b16 %v104
  %v977 = vunpack.c.l.b16 %v105
  %v978 = vunpack.c.l.b16 %v106
  %v979 = vunpack.c.l.b16 %v107
  %v980 = vunpack.c.l.b16 %v108
  %v981 = vunpack.c.l.b16 %v109
  %v982 = vunpack.c.l.b16 %v110
  %v983 = vunpack.c.l.b16 %v111
  %v984 = vunpack.c.l.b16 %v112
  %v985 = vunpack.c.l.b16 %v113
  %v986 = vunpack.c.l.b16 %v114
  %v987 = vunpack.c.l.b16 %v115
  %v988 = vunpack.c.l.b16 %v116
  %v989 = vunpack.c.l.b16 %v117
  %v990 = vunpack.c.l.b16 %v118
  %v991 = vunpack.c.l.b16 %v119
  %v992 = vunpack.c.l.b16 %v120
  %v993 = vunpack.c.l.b16 %v121
  %v994 = vunpack.c.l.b16 %v122
  %v995 = vunpack.c.l.b16 %v123
  %v996 = vunpack.c.l.b16 %v124
  %v997 = vunpack.c.l.b16 %v125
  %v998 = vunpack.c.l.b16 %v126
  %v999 = vunpack.c.l.b16 %v127
  %v1000 = vunpack.c.l.b16 %v128
  %v1001 = vunpack.c.l.b16 %v129
  %v1002 = vunpack.c.l.b16 %v130
  %v1003 = vunpack.c.l.b16 %v131
  %v1004 = vunpack.c.l.b16 %v132
  %v1005 = vunpack.c.l.b16 %v133
  %v1006 = vunpack.c.l.b16 %v134
  %v1007 = vunpack.c.l.b16 %v135
  %v1008 = vunpack.c.l.b16 %v136
  %v1009 = vunpack.c.l.b16 %v137
  %v1010 = vunpack.c.l.b16 %v138
  %v1011 = vunpack.c.l.b16 %v139
  %v1012 = vunpack.c.l.b16 %v140
  %v1013 = vunpack.c.l.b16 %v141
  %v1014 = vunpack.c.l.b16 %v142
  %v1015 = vunpack.c.l.b16 %v143
  %v1016 = vunpack.c.l.b16 %v144
  %v1017 = vunpack.c.l.b16 %v145
  %v1018 = vunpack.c.l.b16 %v146
  %v1019 = vunpack.c.l.b16 %v147
  %v1020 = vunpack.c.l.b16 %v148
  %v1021 = vunpack.c.l.b16 %v149
  %v1022 = vunpack.c.l.b16 %v150
  %v1023 = vunpack.c.l.b16 %v151
  %v1024 = vunpack.c.l.b16 %v152
  %v1025 = vunpack.c.l.b16 %v153
  %v1026 = vunpack.c.l.b16 %v154
  %v1027 = vunpack.c.l.b16 %v155
  %v1028 = vunpack.c.l.b16 %v156
  %v1029 = vunpack.c.l.b16 %v157
  %v1030 = vunpack.c.l.b16 %v158
  %v1031 = vunpack.c.l.b16 %v159
  %v1032 = vunpack.c.l.b16 %v160
  %v1033 = vunpack.c.l.b16 %v161
  %v1034 = vunpack.c.l.b16 %v162
  %v1035 = vunpack.c.l.b16 %v163
  %v1036 = vunpack.c.l.b16 %v164
  %v1037 = vunpack.c.l.b16 %v165
  %v1038 = vunpack.c.l.b16 %v166
  %v1039 = vunpack.c.l.b16 %v167
  %v1040 = vunpack.c.l.b16 %v168
  %v1041 = vunpack.c.l.b16 %v169
  %v1042 = vunpack.c.l.b16 %v170
  %v1043 = vunpack.c.l.b16 %v171
  %v1044 = vunpack.c.l.b16 %v172
  %v1045 = vunpack.c.l.b16 %v173
  %v1046 = vunpack.c.l.b16 %v174
  %v1047 = vunpack.c.l.b16 %v175
  %v1048 = vunpack.c.l.b16 %v176
  %v1049 = vunpack.c.l.b16 %v177
  %v1050 = vunpack.c.l.b16 %v178
  %v1051 = vunpack.c.l.b16 %v179
  %v1052 = vpack.c.b16 %v925, %v924
  %v1053 = vpack.c.b16 %v927, %v926
  %v1054 = vpack.c.b16 %v929, %v928
  %v1055 = vpack.c.b16 %v931, %v930
  %v1056 = vpack.c.b16 %v933, %v932
  %v1057 = vpack.c.b16 %v935, %v934
  %v1058 = vpack.c.b16 %v937, %v936
  %v1059 = vpack.c.b16 %v939, %v938
  %v1060 = vpack.c.b16 %v941, %v940
  %v1061 = vpack.c.b16 %v943, %v942
  %v1062 = vpack.c.b16 %v945, %v944
  %v1063 = vpack.c.b16 %v947, %v946
  %v1064 = vpack.c.b16 %v949, %v948
  %v1065 = vpack.c.b16 %v951, %v950
  %v1066 = vpack.c.b16 %v953, %v952
  %v1067 = vpack.c.b16 %v955, %v954
  %v1068 = vpack.c.b16 %v957, %v956
  %v1069 = vpack.c.b16 %v959, %v958
  %v1070 = vpack.c.b16 %v961, %v960
  %v1071 = vpack.c.b16 %v963, %v962
  %v1072 = vpack.c.b16 %v965, %v964
  %v1073 = vpack.c.b16 %v967, %v966
  %v1074 = vpack.c.b16 %v969, %v968
  %v1075 = vpack.c.b16 %v971, %v970
  %v1076 = vpack.c.b16 %v973, %v972
  %v1077 = vpack.c.b16 %v975, %v974
  %v1078 = vpack.c.b16 %v977, %v976
  %v1079 = vpack.c.b16 %v979, %v978
  %v1080 = vpack.c.b16 %v981, %v980
  %v1081 = vpack.c.b16 %v983, %v982
  %v1082 = vpack.c.b16 %v985, %v984
  %v1083 = vpack.c.b16 %v987, %v986
  %v1084 = vpack.c.b16 %v989, %v988
  %v1085 = vpack.c.b16 %v991, %v990
  %v1086 = vpack.c.b16 %v993, %v992
  %v1087 = vpack.c.b16 %v995, %v994
  %v1088 = vpack.c.b16 %v997, %v996
  %v1089 = vpack.c.b16 %v999, %v998
  %v1090 = vpack.c.b16 %v1001, %v1000
  %v1091 = vpack.c.b16 %v1003, %v1002
  %v1092 = vpack.c.b16 %v1005, %v1004
  %v1093 = vpack.c.b16 %v1007, %v1006
  %v1094 = vpack.c.b16 %v1009, %v1008
  %v1095 = vpack.c.b16 %v1011, %v1010
  %v1096 = vpack.c.b16 %v1013, %v1012
  %v1097 = vpack.c.b16 %v1015, %v1014
  %v1098 = vpack.c.b16 %v1017, %v1016
  %v1099 = vpack.c.b16 %v1019, %v1018
  %v1100 = vpack.c.b16 %v1021, %v1020
  %v1101 = vpack.c.b16 %v1023, %v1022
  %v1102 = vpack.c.b16 %v1025, %v1024
  %v1103 = vpack.c.b16 %v1027, %v1026
  %v1104 = vpack.c.b16 %v1029, %v1028
  %v1105 = vpack.c.b16 %v1031, %v1030
  %v1106 = vpack.c.b16 %v1033, %v1032
  %v1107 = vpack.c.b16 %v1035, %v1034
  %v1108 = vpack.c.b16 %v1037, %v1036
  %v1109 = vpack.c.b16 %v1039, %v1038
  %v1110 = vpack.c.b16 %v1041, %v1040
  %v1111 = vpack.c.b16 %v1043, %v1042
  %v1112 = vpack.c.b16 %v1045, %v1044
  %v1113 = vpack.c.b16 %v1047, %v1046
  %v1114 = vpack.c.b16 %v1049, %v1048
  %v1115 = vpack.c.b16 %v1051, %v1050
  %1180 = vmatpush.bf16.msra.mxu0 %v1059
  %1181 = vmatpush.bf16.msra.mxu0 %v1058
  %1182 = vmatpush.bf16.msra.mxu0 %v1057
  %1183 = vmatpush.bf16.msra.mxu0 %v1056
  %1184 = vmatpush.bf16.msra.mxu0 %v1055
  %1185 = vmatpush.bf16.msra.mxu0 %v1054
  %1186 = vmatpush.bf16.msra.mxu0 %v1053
  %1187 = vmatpush.bf16.msra.mxu0 %v1052
  %1188 = vmatmul.bf16.gmra.mxu0 %v28
  %v1189 = vpop.f32.mrf.mxu0
  %v1190 = vadd.f32 %v793, %v1189
  %v1191 = vpop.f32.mrf.mxu0
  %1192 = vdwg.mxu0
  %1193 = vmatpush.bf16.msra.mxu0 %v1067
  %1194 = vmatpush.bf16.msra.mxu0 %v1066
  %1195 = vmatpush.bf16.msra.mxu0 %v1065
  %1196 = vmatpush.bf16.msra.mxu0 %v1064
  %1197 = vmatpush.bf16.msra.mxu0 %v1063
  %1198 = vmatpush.bf16.msra.mxu0 %v1062
  %1199 = vmatpush.bf16.msra.mxu0 %v1061
  %1200 = vmatpush.bf16.msra.mxu0 %v1060
  %1201 = vmatmul.bf16.gmra.mxu0 %v29
  %v1202 = vpop.f32.mrf.mxu0
  %v1203 = vadd.f32 %v1190, %v1202
  %v1204 = vpop.f32.mrf.mxu0
  %1205 = vdwg.mxu0
  %1206 = vmatpush.bf16.msra.mxu0 %v1075
  %1207 = vmatpush.bf16.msra.mxu0 %v1074
  %1208 = vmatpush.bf16.msra.mxu0 %v1073
  %1209 = vmatpush.bf16.msra.mxu0 %v1072
  %1210 = vmatpush.bf16.msra.mxu0 %v1071
  %1211 = vmatpush.bf16.msra.mxu0 %v1070
  %1212 = vmatpush.bf16.msra.mxu0 %v1069
  %1213 = vmatpush.bf16.msra.mxu0 %v1068
  %1214 = vmatmul.bf16.gmra.mxu0 %v30
  %v1215 = vpop.f32.mrf.mxu0
  %v1216 = vadd.f32 %v1203, %v1215
  %v1217 = vpop.f32.mrf.mxu0
  %1218 = vdwg.mxu0
  %1219 = vmatpush.bf16.msra.mxu0 %v1083
  %1220 = vmatpush.bf16.msra.mxu0 %v1082
  %1221 = vmatpush.bf16.msra.mxu0 %v1081
  %1222 = vmatpush.bf16.msra.mxu0 %v1080
  %1223 = vmatpush.bf16.msra.mxu0 %v1079
  %1224 = vmatpush.bf16.msra.mxu0 %v1078
  %1225 = vmatpush.bf16.msra.mxu0 %v1077
  %1226 = vmatpush.bf16.msra.mxu0 %v1076
  %1227 = vmatmul.bf16.gmra.mxu0 %v31
  %v1228 = vpop.f32.mrf.mxu0
  %v1229 = vadd.f32 %v1216, %v1228
  %v1230 = vpop.f32.mrf.mxu0
  %1231 = vdwg.mxu0
  %1232 = vmatpush.bf16.msra.mxu0 %v1091
  %1233 = vmatpush.bf16.msra.mxu0 %v1090
  %1234 = vmatpush.bf16.msra.mxu0 %v1089
  %1235 = vmatpush.bf16.msra.mxu0 %v1088
  %1236 = vmatpush.bf16.msra.mxu0 %v1087
  %1237 = vmatpush.bf16.msra.mxu0 %v1086
  %1238 = vmatpush.bf16.msra.mxu0 %v1085
  %1239 = vmatpush.bf16.msra.mxu0 %v1084
  %1240 = vmatmul.bf16.gmra.mxu0 %v32
  %v1241 = vpop.f32.mrf.mxu0
  %v1242 = vadd.f32 %v1229, %v1241
  %v1243 = vpop.f32.mrf.mxu0
  %1244 = vdwg.mxu0
  %1245 = vmatpush.bf16.msra.mxu0 %v1099
  %1246 = vmatpush.bf16.msra.mxu0 %v1098
  %1247 = vmatpush.bf16.msra.mxu0 %v1097
  %1248 = vmatpush.bf16.msra.mxu0 %v1096
  %1249 = vmatpush.bf16.msra.mxu0 %v1095
  %1250 = vmatpush.bf16.msra.mxu0 %v1094
  %1251 = vmatpush.bf16.msra.mxu0 %v1093
  %1252 = vmatpush.bf16.msra.mxu0 %v1092
  %1253 = vmatmul.bf16.gmra.mxu0 %v33
  %v1254 = vpop.f32.mrf.mxu0
  %v1255 = vadd.f32 %v1242, %v1254
  %v1256 = vpop.f32.mrf.mxu0
  %1257 = vdwg.mxu0
  %1258 = vmatpush.bf16.msra.mxu0 %v1107
  %1259 = vmatpush.bf16.msra.mxu0 %v1106
  %1260 = vmatpush.bf16.msra.mxu0 %v1105
  %1261 = vmatpush.bf16.msra.mxu0 %v1104
  %1262 = vmatpush.bf16.msra.mxu0 %v1103
  %1263 = vmatpush.bf16.msra.mxu0 %v1102
  %1264 = vmatpush.bf16.msra.mxu0 %v1101
  %1265 = vmatpush.bf16.msra.mxu0 %v1100
  %1266 = vmatmul.bf16.gmra.mxu0 %v34
  %v1267 = vpop.f32.mrf.mxu0
  %v1268 = vadd.f32 %v1255, %v1267
  %v1269 = vpop.f32.mrf.mxu0
  %1270 = vdwg.mxu0
  %1271 = vmatpush.bf16.msra.mxu0 %v1115
  %1272 = vmatpush.bf16.msra.mxu0 %v1114
  %1273 = vmatpush.bf16.msra.mxu0 %v1113
  %1274 = vmatpush.bf16.msra.mxu0 %v1112
  %1275 = vmatpush.bf16.msra.mxu0 %v1111
  %1276 = vmatpush.bf16.msra.mxu0 %v1110
  %1277 = vmatpush.bf16.msra.mxu0 %v1109
  %1278 = vmatpush.bf16.msra.mxu0 %v1108
  %1279 = vmatmul.bf16.gmra.mxu0 %v35
  %v1280 = vpop.f32.mrf.mxu0
  %v1281 = vadd.f32 %v1268, %v1280
  %v1282 = vpop.f32.mrf.mxu0
  %1283 = vdwg.mxu0
  %v1284 = vld [vmem:[%s4] sm:$0x1]
  %v1286 = vperm.slane %v1284, 0
  %v1288 = vadd.f32 %v1281, %v1286
  %vm1289 = vcmask 130048
  %v1290 = vsel %vm1289, %v1288, -inf
  %1291 = vmax.xlane.f32.xlu0 %v1290
  %v1292 = vpop.xlane.xlu0 %1291
  %v1293 = vsub.f32 %v1288, %v1292
  %v1294 = vmul.f32 %v1293, 1.442695
  %v1295 = vpow.pop %v1294
  %v1296 = vsel %vm1289, %v1295, 0.0
  %1297 = vadd.xlane.f32.xlu0 %v1296
  %v1298 = vpop.xlane.xlu0 %1297
  %v1299 = vlog2.pop %v1298
  %v1300 = vmul.f32 %v1299, 0.6931472
  %v1301 = vrcp.pop %v1298
  %v1302 = vmul.f32 %v1298, %v1301
  %v1303 = vsub.f32 1.0, %v1302
  %v1304 = vmul.f32 %v1301, %v1303
  %v1305 = vadd.f32 %v1301, %v1304
  %vm1306 = vweird.f32 %v1298
  %vm1307 = vweird.f32 %v1301
  %vm1308 = vmor %vm1306, %vm1307
  %v1309 = vsel %vm1308, %v1301, %v1305
  %v1310 = vand.u32 2147483647, %v1298
  %vm1311 = vcmp.eq.f32.partialorder %v1310, 8.507059e+37
  %v1312 = vand.u32 %v1298, 2147483648
  %v1313 = vor.u32 1.1754944e-38, %v1312
  %v1314 = vsel %vm1311, %v1313, %v1309
  %v1315 = vmul.f32 %v1295, %v1314
  %v1316 = vsub.f32 %v1293, %v1300
  %v1317 = vmul.f32 %v1315, %v1316
  %v1318 = vsel %vm1289, %v1317, 0.0
  %1319 = vadd.xlane.f32.xlu0 %v1318
  %v1320 = vpop.xlane.xlu0 %1319
  %v1321 = vsub.f32 0.0, %v1320
  %v1322 = vlaneseq
  %v1323 = vand.u32 %v1322, 127
  %vm1324 = vcmp.eq.f32.partialorder %v1288, %v1292
  %v1325 = vsel %vm1324, %v1323, 128
  %v1326 = vsel %vm1289, %v1325, 2147483647
  %v1327 = vand.u32 %v1326, 65535
  %v1328 = vshra.s32 %v1326, 16
  %v1329 = vcvt.s32.f32 %v1327
  %v1330 = vcvt.s32.f32 %v1328
  %1331 = vmin.xlane.f32.xlu0 %v1330
  %v1332 = vpop.xlane.xlu0 %1331
  %vm1333 = vcmp.eq.f32.partialorder %v1330, %v1332
  %v1334 = vsel %vm1333, %v1329, inf
  %1335 = vmin.xlane.f32.xlu0 %v1334
  %v1336 = vpop.xlane.xlu0 %1335
  %v1337 = vcvt.f32.s32 %v1336
  %v1338 = vcvt.f32.s32 %v1332
  %v1339 = vshll.u32 %v1338, 16
  %v1340 = vadd.s32 %v1339, %v1337
  %v1341 = vlaneseq
  %v1342 = vshrl.u32 %v1341, 7
  %v1343 = vadd.s32 %v1342, 8
  %vm1344 = vcmp.eq.s32.totalorder %v1323, %v1342
  %vm1345 = vcmp.eq.s32.totalorder %v1323, %v1343
  %v1346 = vsel %vm1344, 1, 0
  %v1347 = vsel %vm1345, 1, 0
  %v1348 = vcvt.s32.f32 %v1346
  %v1349 = vcvt.s32.f32 %v1347
  %v1350 = vadd.s32 %v1342, 16
  %v1351 = vadd.s32 %v1343, 16
  %vm1352 = vcmp.eq.s32.totalorder %v1323, %v1350
  %vm1353 = vcmp.eq.s32.totalorder %v1323, %v1351
  %v1354 = vsel %vm1352, 1, 0
  %v1355 = vsel %vm1353, 1, 0
  %v1356 = vcvt.s32.f32 %v1354
  %v1357 = vcvt.s32.f32 %v1355
  %v1359 = vsel %vm1289, %v1316, 0
  %1361 = vmatpush.msra.mxu0 0.0
  %1362 = vmatpush.msra.mxu0 0.0
  %1363 = vmatpush.msra.mxu0 0.0
  %1364 = vmatpush.msra.mxu0 0.0
  %1365 = vmatpush.msra.mxu0 0.0
  %1366 = vmatpush.msra.mxu0 0.0
  %1367 = vmatpush.msra.mxu0 0.0
  %1368 = vmatpush.msra.mxu0 0.0
  %1369 = vmatpush.msra.mxu0 0.0
  %1370 = vmatpush.msra.mxu0 0.0
  %1371 = vmatpush.msra.mxu0 0.0
  %1372 = vmatpush.msra.mxu0 0.0
  %1373 = vmatpush.msra.mxu0 0.0
  %1374 = vmatpush.msra.mxu0 0.0
  %1375 = vmatpush.msra.mxu0 %v1357
  %1376 = vmatpush.msra.mxu0 %v1356
  %1377 = vmatmul.f32.gmra.mxu0 %v1359
  %v1378 = vpop.f32.mrf.mxu0
  %v1379 = vadd.f32 0.0, %v1378
  %1380 = vdwg.mxu0
  %v1382 = vsel %vm1289, %v1315, 0
  %1384 = vmatpush.msra.mxu0 0.0
  %1385 = vmatpush.msra.mxu0 0.0
  %1386 = vmatpush.msra.mxu0 0.0
  %1387 = vmatpush.msra.mxu0 0.0
  %1388 = vmatpush.msra.mxu0 0.0
  %1389 = vmatpush.msra.mxu0 0.0
  %1390 = vmatpush.msra.mxu0 0.0
  %1391 = vmatpush.msra.mxu0 0.0
  %1392 = vmatpush.msra.mxu0 0.0
  %1393 = vmatpush.msra.mxu0 0.0
  %1394 = vmatpush.msra.mxu0 0.0
  %1395 = vmatpush.msra.mxu0 0.0
  %1396 = vmatpush.msra.mxu0 0.0
  %1397 = vmatpush.msra.mxu0 0.0
  %1398 = vmatpush.msra.mxu0 %v1349
  %1399 = vmatpush.msra.mxu0 %v1348
  %1400 = vmatmul.f32.gmra.mxu0 %v1382
  %v1401 = vpop.f32.mrf.mxu0
  %v1402 = vadd.f32 %v1379, %v1401
  %1403 = vdwg.mxu0
  %vm1404 = vcmp.eq.s32.totalorder %v1323, 32
  %v1405 = vsel %vm1404, %v1321, 0.0
  %v1406 = vadd.f32 %v1402, %v1405
  %vm1407 = vcmp.eq.s32.totalorder %v1323, 33
  %v1408 = vsel %vm1407, %v1300, 0.0
  %v1409 = vadd.f32 %v1406, %v1408
  %vm1410 = vcmp.eq.s32.totalorder %v1323, 34
  %v1411 = vcvt.s32.f32 %v1340
  %v1412 = vsel %vm1410, %v1411, 0.0
  %v1413 = vadd.f32 %v1409, %v1412
  %1414 = vst [vmem:[%s5] sm:$0xff] %v1413
  // Predicated region
  $region22: #{forward.1} parent=0 // pred_check
    _
  $region23: #{forward.1} parent=0 // pred_check_branch
    %1416 = sbr.rel (0) target = $region25
  $region24: #{forward.1} parent=0 // pred_region
    _
  $region25: #{forward.1} parent=0 // pred_fallthru
    _
  // Predicated region
  $region26: #{forward.1} parent=0 // pred_check
    _
  $region27: #{forward.1} parent=0 // pred_check_branch
    %1418 = sbr.rel (0) target = $region29
  $region28: #{forward.1} parent=0 // pred_region
    _
  $region29: #{forward.1} parent=0 // pred_fallthru
    _

</llo_original>
